<compile_context>
chip_gen: v6e
topology: v6e:2x2x1
jax: 0.10.0
libtpu: 0.0.40
codegen_flags: <defaults>
</compile_context>

<pallas_src>
import functools

import jax
import jax.numpy as jnp
from jax.experimental import pallas as pl
from jax.experimental.pallas import tpu as pltpu

LANE = 128


def _round_up(x, m):
    return ((x + m - 1) // m) * m


# ---------------------------------------------------------------------------
# Pallas kernels
# ---------------------------------------------------------------------------

def _fused_backbone_kernel(p_ref, sw_ref, sb_ref, pw_ref, pb_ref, g_ref,
                           acc_ref, *, s_valid, ts, num_tiles):
    """Fused stem-conv(+BN+SiLU) -> pointwise-conv(+BN+SiLU) -> GAP.

    grid = (batch, spatial_tiles).  Spatial is a reduction carried in the fp32
    VMEM accumulator: init on the first tile, GAP finalize + store on the last.
    All matmuls are bf16 on the MXU with fp32 accumulation (autocast).
    """
    s_idx = pl.program_id(1)
    last = num_tiles - 1

    @pl.when(s_idx == 0)
    def _():
        acc_ref[...] = jnp.zeros_like(acc_ref)

    x = p_ref[0]                                                  # (ts, K) bf16
    # stem conv (im2col matmul) + folded-BN bias + SiLU
    h = jnp.dot(x, sw_ref[...], preferred_element_type=jnp.float32) + sb_ref[...]
    h = h * jax.nn.sigmoid(h)                                     # SiLU
    h = h.astype(jnp.bfloat16)                                    # autocast conv out

    # pointwise conv + folded-BN bias + SiLU
    y = jnp.dot(h, pw_ref[...], preferred_element_type=jnp.float32) + pb_ref[...]
    y = y * jax.nn.sigmoid(y)                                     # SiLU, fp32

    pad_rows = num_tiles * ts - s_valid
    if pad_rows == 0:
        # No spatial padding anywhere: accumulate unmasked on every tile.
        acc_ref[...] += jnp.sum(y, axis=0, keepdims=True)
    else:
        # Only the last tile contains padded rows; mask them there only
        # (SiLU(bias) != 0 on zero-padded patch rows, so the mask is required).
        @pl.when(s_idx != last)
        def _():
            acc_ref[...] += jnp.sum(y, axis=0, keepdims=True)

        @pl.when(s_idx == last)
        def _():
            row = jax.lax.broadcasted_iota(jnp.int32, y.shape, 0)
            ym = jnp.where(row < (s_valid - last * ts), y, 0.0)
            acc_ref[...] += jnp.sum(ym, axis=0, keepdims=True)

    @pl.when(s_idx == last)
    def _():
        gap = (acc_ref[...] * (1.0 / s_valid)).astype(g_ref.dtype)  # (1, C2)
        # Lane-dense (1, 8, C2) store; wrapper keeps row 0 only.
        g_ref[...] = jnp.broadcast_to(gap[None], g_ref.shape)


def _head_kernel(g_ref, w_ref, b_ref, o_ref):
    """Classifier head: logits = gap @ W + b (bf16 MXU, fp32 accumulate)."""
    logits = jnp.dot(g_ref[...], w_ref[...], preferred_element_type=jnp.float32)
    o_ref[...] = (logits + b_ref[...]).astype(o_ref.dtype)


# ---------------------------------------------------------------------------
# Tiling helpers (portable across v5e / v6e / v7x VMEM budgets)
# ---------------------------------------------------------------------------

def _fused_vmem_bytes(ts, k, c1, c2):
    return (2 * ts * k * 2                      # double-buffered patch tiles (bf16)
            + k * c1 * 2 + c1 * 4               # stem weight + bias (resident)
            + c1 * c2 * 2 + c2 * 4              # pw weight + bias (resident)
            + 2 * 8 * c2 * 2                    # gap output block (double-buffered)
            + c2 * 4                            # fp32 GAP accumulator
            + 6 * ts * max(c1, c2) * 4)         # headroom: fp32 temporaries / spill


def _pick_ts(s, k, c1, c2, *, cap=1024, vmem_budget=20 << 20):
    """Spatial reduction chunk: multiple of 8, as large as the (v7x-safe) VMEM
    budget allows.  No forced multi-step split: the spatial axis is a
    reduction ('arbitrary'), so extra steps are pure overhead on any chip."""
    s_r = _round_up(s, 8)
    ts = min(cap, s_r)
    while ts > 8 and _fused_vmem_bytes(ts, k, c1, c2) > vmem_budget:
        ts = max(8, _round_up(ts // 2, 8))
    return ts


# ---------------------------------------------------------------------------
# Pallas wrappers
# ---------------------------------------------------------------------------

def fused_backbone(patches, stem_w, stem_b, pw_w, pw_b, *, out_dtype=jnp.bfloat16):
    """patches: [N, S, K] bf16 -> per-image GAP features [N, C2] bf16."""
    assert patches.dtype == jnp.bfloat16
    assert stem_w.dtype == jnp.bfloat16 and pw_w.dtype == jnp.bfloat16
    assert stem_b.dtype == jnp.float32 and pw_b.dtype == jnp.float32
    n, s, k = patches.shape
    k2, c1 = stem_w.shape
    c1b, c2 = pw_w.shape
    assert k == k2 and c1 == c1b
    assert stem_b.shape == (1, c1) and pw_b.shape == (1, c2)
    assert c1 % LANE == 0 and c2 % LANE == 0

    ts = _pick_ts(s, k, c1, c2)
    s_pad = _round_up(s, ts)
    if s_pad != s:
        patches = jnp.pad(patches, ((0, 0), (0, s_pad - s), (0, 0)))
    num_tiles = s_pad // ts

    est = _fused_vmem_bytes(ts, k, c1, c2)
    vmem_limit = int(min(28 << 20, max(8 << 20, 2 * est)))   # v7x-safe, > v5e floor

    cost = pl.CostEstimate(
        flops=2 * n * s * (k * c1 + c1 * c2),
        transcendentals=n * s * (c1 + c2),                   # sigmoid (SiLU) x2
        bytes_accessed=(n * s_pad * k * 2                    # patches read
                        + (k * c1 + c1 * c2) * 2 + (c1 + c2) * 4   # weights/biases
                        + n * 8 * c2 * 2))                   # gap write

    kernel = functools.partial(_fused_backbone_kernel,
                               s_valid=s, ts=ts, num_tiles=num_tiles)
    gap = pl.pallas_call(
        kernel,
        out_shape=jax.ShapeDtypeStruct((n, 8, c2), out_dtype),
        grid=(n, num_tiles),
        in_specs=[
            pl.BlockSpec((1, ts, k), lambda b, t: (b, t, 0)),   # patch tile (K unpadded)
            pl.BlockSpec((k, c1), lambda b, t: (0, 0)),         # stem weight (resident)
            pl.BlockSpec((1, c1), lambda b, t: (0, 0)),         # stem folded-BN bias
            pl.BlockSpec((c1, c2), lambda b, t: (0, 0)),        # pw weight (resident)
            pl.BlockSpec((1, c2), lambda b, t: (0, 0)),         # pw folded-BN bias
        ],
        out_specs=pl.BlockSpec((1, 8, c2), lambda b, t: (b, 0, 0)),
        scratch_shapes=[pltpu.VMEM((1, c2), jnp.float32)],       # GAP accumulator
        compiler_params=pltpu.CompilerParams(
            dimension_semantics=("parallel", "arbitrary"),
            vmem_limit_bytes=vmem_limit),
        cost_estimate=cost,
    )(patches, stem_w, stem_b, pw_w, pw_b)
    return gap[:, 0, :]                                          # [N, C2] bf16


def head(gap, hd_w, hd_b, *, out_dtype=jnp.bfloat16):
    """One small matmul for the whole batch: [N_pad8, C2] @ [C2, NCp] + b."""
    assert gap.dtype == jnp.bfloat16 and hd_w.dtype == jnp.bfloat16
    assert hd_b.dtype == jnp.float32
    n, c2 = gap.shape
    c2b, nc = hd_w.shape
    assert c2 == c2b and hd_b.shape == (1, nc)
    assert c2 % LANE == 0 and nc % LANE == 0

    n_pad = _round_up(n, 8)
    if n_pad != n:
        gap = jnp.pad(gap, ((0, n_pad - n), (0, 0)))

    out = pl.pallas_call(
        _head_kernel,
        out_shape=jax.ShapeDtypeStruct((n_pad, nc), out_dtype),
        grid=(1,),
        in_specs=[
            pl.BlockSpec((n_pad, c2), lambda i: (0, 0)),
            pl.BlockSpec((c2, nc), lambda i: (0, 0)),
            pl.BlockSpec((1, nc), lambda i: (0, 0)),
        ],
        out_specs=pl.BlockSpec((n_pad, nc), lambda i: (0, 0)),
        compiler_params=pltpu.CompilerParams(dimension_semantics=("arbitrary",)),
    )(gap, hd_w, hd_b)
    return out[:n]


# ---------------------------------------------------------------------------
# JAX glue (layout plumbing only -- no hot-path compute here)
# ---------------------------------------------------------------------------

def im2col_khkwc(x_nchw, kh, kw, stride, pad):
    """NCHW -> patches [N, OH*OW, KH*KW*C], tap-major / channel-minor."""
    # TODO(synk): replace with an in-kernel 9-tap DMA gather from padded NHWC
    # to avoid materializing the patch tensor in HBM.
    n, c, h, w = x_nchw.shape
    x = jnp.transpose(x_nchw, (0, 2, 3, 1))                       # NHWC
    xp = jnp.pad(x, ((0, 0), (pad, pad), (pad, pad), (0, 0)))
    oh = (h + 2 * pad - kh) // stride + 1
    ow = (w + 2 * pad - kw) // stride + 1
    taps = []
    for i in range(kh):
        for j in range(kw):
            taps.append(xp[:, i:i + stride * oh:stride,
                           j:j + stride * ow:stride, :])          # [N,OH,OW,C]
    p = jnp.stack(taps, axis=3)                                   # [N,OH,OW,KH*KW,C]
    return p.reshape(n, oh * ow, kh * kw * c), oh, ow


def fold_bn(gamma, beta, mean, var, eps=1e-5):
    scale = gamma / jnp.sqrt(var + eps)
    bias = beta - mean * scale
    return scale, bias


def _pad2d(a, rows, cols):
    return jnp.pad(a, ((0, rows - a.shape[0]), (0, cols - a.shape[1])))


def init_params(key, in_chans=3, stem_ch=16, block_ch=32, num_classes=10):
    ks = jax.random.split(key, 12)
    p = {}

    k_stem = in_chans * 9                     # 27 — kept UNPADDED in HBM
    c1_pad = _round_up(stem_ch, LANE)
    c2_pad = _round_up(block_ch, LANE)
    nc_pad = _round_up(num_classes, LANE)

    # stem: Conv2d(in_chans, stem_ch, 3, s=2, p=1, bias=False) + BN + SiLU
    w = jax.random.normal(ks[0], (stem_ch, in_chans, 3, 3), jnp.float32) * 0.1
    w = jnp.transpose(w, (2, 3, 1, 0)).reshape(k_stem, stem_ch)   # (KH,KW,C) -> O
    scale, bias = fold_bn(
        1.0 + 0.1 * jax.random.normal(ks[1], (stem_ch,)),
        0.1 * jax.random.normal(ks[2], (stem_ch,)),
        0.1 * jax.random.normal(ks[3], (stem_ch,)),
        jax.random.uniform(ks[4], (stem_ch,), minval=0.5, maxval=1.5))
    p["stem_w"] = _pad2d(w * scale[None, :], k_stem, c1_pad).astype(jnp.bfloat16)
    p["stem_b"] = _pad2d(bias[None, :], 1, c1_pad).astype(jnp.float32)

    # pointwise block: Conv2d(stem_ch, block_ch, 1, bias=False) + BN + SiLU
    w = jax.random.normal(ks[5], (block_ch, stem_ch, 1, 1), jnp.float32) * 0.1
    w = jnp.transpose(w, (1, 0, 2, 3)).reshape(stem_ch, block_ch)
    scale, bias = fold_bn(
        1.0 + 0.1 * jax.random.normal(ks[6], (block_ch,)),
        0.1 * jax.random.normal(ks[7], (block_ch,)),
        0.1 * jax.random.normal(ks[8], (block_ch,)),
        jax.random.uniform(ks[9], (block_ch,), minval=0.5, maxval=1.5))
    p["pw_w"] = _pad2d(w * scale[None, :], c1_pad, c2_pad).astype(jnp.bfloat16)
    p["pw_b"] = _pad2d(bias[None, :], 1, c2_pad).astype(jnp.float32)

    # classifier head: Linear(block_ch, num_classes)
    w = jax.random.normal(ks[10], (num_classes, block_ch), jnp.float32) * 0.1
    p["head_w"] = _pad2d(w.T, c2_pad, nc_pad).astype(jnp.bfloat16)
    p["head_b"] = _pad2d((0.1 * jax.random.normal(ks[11], (num_classes,)))[None, :],
                         1, nc_pad).astype(jnp.float32)
    return p


def lottenet_forward(x_nchw, params, num_classes=10):
    """x_nchw: [N, 3, H, W] f32 -> logits [N, num_classes] (bf16, autocast)."""
    x = x_nchw.astype(jnp.bfloat16)                          # autocast input cast

    # stem conv 3x3 / stride 2 via im2col (K stays 27 in HBM — no pad to 128)
    patches, _, _ = im2col_khkwc(x, 3, 3, stride=2, pad=1)   # [N, S, 27] bf16

    # fused: stem matmul + BN + SiLU -> pointwise matmul + BN + SiLU -> GAP
    gap = fused_backbone(patches, params["stem_w"], params["stem_b"],
                         params["pw_w"], params["pw_b"])     # [N, C2p] bf16

    # classifier head, once for the whole batch
    logits_pad = head(gap, params["head_w"], params["head_b"])   # [N, NCp] bf16
    return logits_pad[:, :num_classes]


if __name__ == "__main__":
    key = jax.random.PRNGKey(0)
    k_x, k_p = jax.random.split(key)

    # small shapes consistent with an image classifier: NCHW input
    x = jax.random.normal(k_x, (2, 3, 16, 16), jnp.float32)
    params = init_params(k_p, in_chans=3, stem_ch=16, block_ch=32, num_classes=10)

    logits = jax.jit(lottenet_forward)(x, params)
    jax.block_until_ready(logits)
    assert logits.shape == (2, 10), logits.shape
    assert bool(jnp.all(jnp.isfinite(logits.astype(jnp.float32))))
    print("KERNEL_OK")
</pallas_src>

<mosaic_0001>
module attributes {stable_mosaic.version = 11 : i64} {
  func.func @_fused_backbone_kernel(%arg0: i32, %arg1: i32, %arg2: memref<1x64x27xbf16, #tpu.memory_space<vmem>>, %arg3: memref<27x128xbf16, #tpu.memory_space<vmem>>, %arg4: memref<1x128xf32, #tpu.memory_space<vmem>>, %arg5: memref<128x128xbf16, #tpu.memory_space<vmem>>, %arg6: memref<1x128xf32, #tpu.memory_space<vmem>>, %arg7: memref<1x8x128xbf16, #tpu.memory_space<vmem>>, %arg8: memref<1x128xf32, #tpu.memory_space<vmem>>) attributes {dimension_semantics = [#tpu.dimension_semantics<parallel>, #tpu.dimension_semantics<arbitrary>], iteration_bounds = array<i64: 2, 1>, scalar_prefetch = 0 : i64, scratch_operands = 1 : i64, tpu.core_type = #tpu.core_type<tc>, window_params = [{transform_indices = @transform_0, window_bounds = array<i64: 1, 64, 27>}, {pipeline_mode = #tpu.pipeline_mode<synchronous>, transform_indices = @transform_1, window_bounds = array<i64: 27, 128>}, {pipeline_mode = #tpu.pipeline_mode<synchronous>, transform_indices = @transform_2, window_bounds = array<i64: 1, 128>}, {pipeline_mode = #tpu.pipeline_mode<synchronous>, transform_indices = @transform_3, window_bounds = array<i64: 128, 128>}, {pipeline_mode = #tpu.pipeline_mode<synchronous>, transform_indices = @transform_4, window_bounds = array<i64: 1, 128>}, {transform_indices = @transform_5, window_bounds = array<i64: 1, 8, 128>}]} {
    %c0_i32 = arith.constant 0 : i32
    %0 = arith.cmpi eq, %arg1, %c0_i32 : i32
    %1 = arith.extui %0 : i1 to i32
    %c0_i32_0 = arith.constant 0 : i32
    %2 = arith.cmpi ne, %1, %c0_i32_0 : i32
    scf.if %2 {
      %cst_21 = arith.constant 0.000000e+00 : f32
      %36 = vector.broadcast %cst_21 : f32 to vector<1x128xf32>
      %c0_22 = arith.constant 0 : index
      %c0_23 = arith.constant 0 : index
      %37 = vector.load %arg8[%c0_22, %c0_23] : memref<1x128xf32, #tpu.memory_space<vmem>>, vector<1x128xf32>
      tpu.vector_store %arg8[%c0_22, %c0_23], %36 {strides = array<i32>} : memref<1x128xf32, #tpu.memory_space<vmem>>, vector<1x128xf32>,
    } else {
    }
    %c0 = arith.constant 0 : index
    %c0_1 = arith.constant 0 : index
    %c0_2 = arith.constant 0 : index
    %3 = vector.load %arg2[%c0, %c0_1, %c0_2] : memref<1x64x27xbf16, #tpu.memory_space<vmem>>, vector<1x64x27xbf16>
    %4 = vector.shape_cast %3 : vector<1x64x27xbf16> to vector<64x27xbf16>
    %c0_3 = arith.constant 0 : index
    %c0_4 = arith.constant 0 : index
    %5 = vector.load %arg3[%c0_3, %c0_4] : memref<27x128xbf16, #tpu.memory_space<vmem>>, vector<27x128xbf16>
    %cst = arith.constant dense<0.000000e+00> : vector<64x128xf32>
    %6 = tpu.matmul %4, %5, %cst {dimension_numbers = #tpu.dot_dimension_numbers<[1], [0], [0], [1], [0, 0, 1, 1], [], []>} : vector<64x27xbf16>, vector<27x128xbf16>, vector<64x128xf32> -> vector<64x128xf32>
    %c0_5 = arith.constant 0 : index
    %c0_6 = arith.constant 0 : index
    %7 = vector.load %arg4[%c0_5, %c0_6] : memref<1x128xf32, #tpu.memory_space<vmem>>, vector<1x128xf32>
    %8 = vector.broadcast %7 : vector<1x128xf32> to vector<64x128xf32>
    %9 = arith.addf %6, %8 : vector<64x128xf32>
    %10 = arith.negf %9 : vector<64x128xf32>
    %11 = math.exp %10 : vector<64x128xf32>
    %cst_7 = arith.constant 1.000000e+00 : f32
    %12 = vector.broadcast %cst_7 : f32 to vector<64x128xf32>
    %13 = arith.addf %12, %11 : vector<64x128xf32>
    %14 = arith.divf %12, %13 : vector<64x128xf32>
    %15 = arith.mulf %9, %14 : vector<64x128xf32>
    %16 = arith.truncf %15 : vector<64x128xf32> to vector<64x128xbf16>
    %c0_8 = arith.constant 0 : index
    %c0_9 = arith.constant 0 : index
    %17 = vector.load %arg5[%c0_8, %c0_9] : memref<128x128xbf16, #tpu.memory_space<vmem>>, vector<128x128xbf16>
    %cst_10 = arith.constant dense<0.000000e+00> : vector<64x128xf32>
    %18 = tpu.matmul %16, %17, %cst_10 {dimension_numbers = #tpu.dot_dimension_numbers<[1], [0], [0], [1], [0, 0, 1, 1], [], []>} : vector<64x128xbf16>, vector<128x128xbf16>, vector<64x128xf32> -> vector<64x128xf32>
    %c0_11 = arith.constant 0 : index
    %c0_12 = arith.constant 0 : index
    %19 = vector.load %arg6[%c0_11, %c0_12] : memref<1x128xf32, #tpu.memory_space<vmem>>, vector<1x128xf32>
    %20 = vector.broadcast %19 : vector<1x128xf32> to vector<64x128xf32>
    %21 = arith.addf %18, %20 : vector<64x128xf32>
    %22 = arith.negf %21 : vector<64x128xf32>
    %23 = math.exp %22 : vector<64x128xf32>
    %cst_13 = arith.constant 1.000000e+00 : f32
    %24 = vector.broadcast %cst_13 : f32 to vector<64x128xf32>
    %25 = arith.addf %24, %23 : vector<64x128xf32>
    %26 = arith.divf %24, %25 : vector<64x128xf32>
    %27 = arith.mulf %21, %26 : vector<64x128xf32>
    %c0_14 = arith.constant 0 : index
    %c0_15 = arith.constant 0 : index
    %28 = vector.load %arg8[%c0_14, %c0_15] : memref<1x128xf32, #tpu.memory_space<vmem>>, vector<1x128xf32>
    %cst_16 = arith.constant dense<0.000000e+00> : vector<128xf32>
    %29 = vector.multi_reduction <add>, %27, %cst_16 [0] : vector<64x128xf32> to vector<128xf32>
    %30 = vector.shape_cast %29 : vector<128xf32> to vector<1x128xf32>
    %31 = arith.addf %28, %30 : vector<1x128xf32>
    %c0_17 = arith.constant 0 : index
    %c0_18 = arith.constant 0 : index
    %32 = vector.load %arg8[%c0_17, %c0_18] : memref<1x128xf32, #tpu.memory_space<vmem>>, vector<1x128xf32>
    tpu.vector_store %arg8[%c0_17, %c0_18], %31 {strides = array<i32>} : memref<1x128xf32, #tpu.memory_space<vmem>>, vector<1x128xf32>,
    %c0_i32_19 = arith.constant 0 : i32
    %33 = arith.cmpi eq, %arg1, %c0_i32_19 : i32
    %34 = arith.extui %33 : i1 to i32
    %c0_i32_20 = arith.constant 0 : i32
    %35 = arith.cmpi ne, %34, %c0_i32_20 : i32
    scf.if %35 {
      %c0_21 = arith.constant 0 : index
      %c0_22 = arith.constant 0 : index
      %36 = vector.load %arg8[%c0_21, %c0_22] : memref<1x128xf32, #tpu.memory_space<vmem>>, vector<1x128xf32>
      %cst_23 = arith.constant 1.562500e-02 : f32
      %37 = vector.broadcast %cst_23 : f32 to vector<1x128xf32>
      %38 = arith.mulf %36, %37 : vector<1x128xf32>
      %39 = arith.truncf %38 : vector<1x128xf32> to vector<1x128xbf16>
      %40 = vector.shape_cast %39 : vector<1x128xbf16> to vector<1x1x128xbf16>
      %41 = vector.shape_cast %40 : vector<1x1x128xbf16> to vector<1x1x128xbf16>
      %42 = vector.broadcast %41 : vector<1x1x128xbf16> to vector<1x8x128xbf16>
      %c0_24 = arith.constant 0 : index
      %c0_25 = arith.constant 0 : index
      %c0_26 = arith.constant 0 : index
      %43 = vector.load %arg7[%c0_24, %c0_25, %c0_26] : memref<1x8x128xbf16, #tpu.memory_space<vmem>>, vector<1x8x128xbf16>
      tpu.vector_store %arg7[%c0_24, %c0_25, %c0_26], %42 {strides = array<i32>} : memref<1x8x128xbf16, #tpu.memory_space<vmem>>, vector<1x8x128xbf16>,
    } else {
    }
    return
  }
  func.func @transform_0(%arg0: i32, %arg1: i32) -> (i32, i32, i32) {
    %c0_i32 = arith.constant 0 : i32
    %c0_i32_0 = arith.constant 0 : i32
    return %arg0, %arg1, %c0_i32 : i32, i32, i32
  }
  func.func @transform_1(%arg0: i32, %arg1: i32) -> (i32, i32) {
    %c0_i32 = arith.constant 0 : i32
    %c0_i32_0 = arith.constant 0 : i32
    %c0_i32_1 = arith.constant 0 : i32
    return %c0_i32, %c0_i32_0 : i32, i32
  }
  func.func @transform_2(%arg0: i32, %arg1: i32) -> (i32, i32) {
    %c0_i32 = arith.constant 0 : i32
    %c0_i32_0 = arith.constant 0 : i32
    %c0_i32_1 = arith.constant 0 : i32
    return %c0_i32, %c0_i32_0 : i32, i32
  }
  func.func @transform_3(%arg0: i32, %arg1: i32) -> (i32, i32) {
    %c0_i32 = arith.constant 0 : i32
    %c0_i32_0 = arith.constant 0 : i32
    %c0_i32_1 = arith.constant 0 : i32
    return %c0_i32, %c0_i32_0 : i32, i32
  }
  func.func @transform_4(%arg0: i32, %arg1: i32) -> (i32, i32) {
    %c0_i32 = arith.constant 0 : i32
    %c0_i32_0 = arith.constant 0 : i32
    %c0_i32_1 = arith.constant 0 : i32
    return %c0_i32, %c0_i32_0 : i32, i32
  }
  func.func @transform_5(%arg0: i32, %arg1: i32) -> (i32, i32, i32) {
    %c0_i32 = arith.constant 0 : i32
    %c0_i32_0 = arith.constant 0 : i32
    %c0_i32_1 = arith.constant 0 : i32
    return %arg0, %c0_i32, %c0_i32_0 : i32, i32, i32
  }
}

module attributes {stable_mosaic.version = 11 : i64} {
  func.func @_head_kernel(%arg0: i32, %arg1: memref<8x128xbf16, #tpu.memory_space<vmem>>, %arg2: memref<128x128xbf16, #tpu.memory_space<vmem>>, %arg3: memref<1x128xf32, #tpu.memory_space<vmem>>, %arg4: memref<8x128xbf16, #tpu.memory_space<vmem>>) attributes {dimension_semantics = [#tpu.dimension_semantics<arbitrary>], iteration_bounds = array<i64: 1>, scalar_prefetch = 0 : i64, scratch_operands = 0 : i64, tpu.core_type = #tpu.core_type<tc>, window_params = [{pipeline_mode = #tpu.pipeline_mode<synchronous>, transform_indices = @transform_0, window_bounds = array<i64: 8, 128>}, {pipeline_mode = #tpu.pipeline_mode<synchronous>, transform_indices = @transform_1, window_bounds = array<i64: 128, 128>}, {pipeline_mode = #tpu.pipeline_mode<synchronous>, transform_indices = @transform_2, window_bounds = array<i64: 1, 128>}, {pipeline_mode = #tpu.pipeline_mode<synchronous>, transform_indices = @transform_3, window_bounds = array<i64: 8, 128>}]} {
    %c0 = arith.constant 0 : index
    %c0_0 = arith.constant 0 : index
    %0 = vector.load %arg1[%c0, %c0_0] : memref<8x128xbf16, #tpu.memory_space<vmem>>, vector<8x128xbf16>
    %c0_1 = arith.constant 0 : index
    %c0_2 = arith.constant 0 : index
    %1 = vector.load %arg2[%c0_1, %c0_2] : memref<128x128xbf16, #tpu.memory_space<vmem>>, vector<128x128xbf16>
    %cst = arith.constant dense<0.000000e+00> : vector<8x128xf32>
    %2 = tpu.matmul %0, %1, %cst {dimension_numbers = #tpu.dot_dimension_numbers<[1], [0], [0], [1], [0, 0, 1, 1], [], []>} : vector<8x128xbf16>, vector<128x128xbf16>, vector<8x128xf32> -> vector<8x128xf32>
    %c0_3 = arith.constant 0 : index
    %c0_4 = arith.constant 0 : index
    %3 = vector.load %arg3[%c0_3, %c0_4] : memref<1x128xf32, #tpu.memory_space<vmem>>, vector<1x128xf32>
    %4 = vector.broadcast %3 : vector<1x128xf32> to vector<8x128xf32>
    %5 = arith.addf %2, %4 : vector<8x128xf32>
    %6 = arith.truncf %5 : vector<8x128xf32> to vector<8x128xbf16>
    %c0_5 = arith.constant 0 : index
    %c0_6 = arith.constant 0 : index
    %7 = vector.load %arg4[%c0_5, %c0_6] : memref<8x128xbf16, #tpu.memory_space<vmem>>, vector<8x128xbf16>
    tpu.vector_store %arg4[%c0_5, %c0_6], %6 {strides = array<i32>} : memref<8x128xbf16, #tpu.memory_space<vmem>>, vector<8x128xbf16>,
    return
  }
  func.func @transform_0(%arg0: i32) -> (i32, i32) {
    %c0_i32 = arith.constant 0 : i32
    %c0_i32_0 = arith.constant 0 : i32
    %c0_i32_1 = arith.constant 0 : i32
    return %c0_i32, %c0_i32_0 : i32, i32
  }
  func.func @transform_1(%arg0: i32) -> (i32, i32) {
    %c0_i32 = arith.constant 0 : i32
    %c0_i32_0 = arith.constant 0 : i32
    %c0_i32_1 = arith.constant 0 : i32
    return %c0_i32, %c0_i32_0 : i32, i32
  }
  func.func @transform_2(%arg0: i32) -> (i32, i32) {
    %c0_i32 = arith.constant 0 : i32
    %c0_i32_0 = arith.constant 0 : i32
    %c0_i32_1 = arith.constant 0 : i32
    return %c0_i32, %c0_i32_0 : i32, i32
  }
  func.func @transform_3(%arg0: i32) -> (i32, i32) {
    %c0_i32 = arith.constant 0 : i32
    %c0_i32_0 = arith.constant 0 : i32
    %c0_i32_1 = arith.constant 0 : i32
    return %c0_i32, %c0_i32_0 : i32, i32
  }
}

</mosaic_0001>

<llo_original>
// kernel: lottenet_forward.3
$region0: #{lottenet_forward.3}
  #allocation0 [shape = 'u32[]', space=smem, size = 0x4, offset = 0x4, fixed_abs, tag = 'smem constant byte address 0x4 - core index']
  #allocation1 [shape = 'u32[144,128]{1,0:T(1,128)}', space=vmem, size = 0x12000, scoped, tag = 'internal scratch']
  %s0 = inlined_call_operand.vmem [shape: bf16[8,128], index: 0, kind: input, shape index: {}]
  %s1 = inlined_call_operand.vmem [shape: bf16[128,128], index: 1, kind: input, shape index: {}]
  %s2 = inlined_call_operand.vmem [shape: f32[1,128], index: 2, kind: input, shape index: {}]
  %s3 = inlined_call_operand.vmem [shape: bf16[8,128], index: 3, kind: output, shape index: {}]
  %s4 = sld [smem:[#allocation0]]
  $region22: #{lottenet_forward.3} parent=0
    _
  %s6 = ssub.s32 1, %s4
  %s7 = scalar_select 0, %s6, %s4
  // Predicated region
  $region2: #{lottenet_forward.3} parent=0 // pred_check
    _
  $region3: #{lottenet_forward.3} parent=0 // pred_check_branch
    %9 = sbr.rel (0) target = $region5
  $region4: #{lottenet_forward.3} parent=0 // pred_region
    _
  $region5: #{lottenet_forward.3} parent=0 // pred_fallthru
    _
  // Predicated region
  $region6: #{lottenet_forward.3} parent=0 // pred_check
    _
  $region7: #{lottenet_forward.3} parent=0 // pred_check_branch
    %11 = sbr.rel (0) target = $region9
  $region8: #{lottenet_forward.3} parent=0 // pred_region
    _
  $region9: #{lottenet_forward.3} parent=0 // pred_fallthru
    _
  // Predicated region
  $region10: #{lottenet_forward.3} parent=0 // pred_check
    _
  $region11: #{lottenet_forward.3} parent=0 // pred_check_branch
    %13 = sbr.rel (0) target = $region13
  $region12: #{lottenet_forward.3} parent=0 // pred_region
    _
  $region13: #{lottenet_forward.3} parent=0 // pred_fallthru
    _
  %v15 = vld [vmem:[%s0] sm:$0xf]
  %v16 = vld [vmem:[%s1] sm:$0xf]
  %v17 = vld [vmem:[%s1 + $0x4] sm:$0xf]
  %v18 = vld [vmem:[%s1 + $0x8] sm:$0xf]
  %v19 = vld [vmem:[%s1 + $0xc] sm:$0xf]
  %v20 = vld [vmem:[%s1 + $0x10] sm:$0xf]
  %v21 = vld [vmem:[%s1 + $0x14] sm:$0xf]
  %v22 = vld [vmem:[%s1 + $0x18] sm:$0xf]
  %v23 = vld [vmem:[%s1 + $0x1c] sm:$0xf]
  %v24 = vld [vmem:[%s1 + $0x20] sm:$0xf]
  %v25 = vld [vmem:[%s1 + $0x24] sm:$0xf]
  %v26 = vld [vmem:[%s1 + $0x28] sm:$0xf]
  %v27 = vld [vmem:[%s1 + $0x2c] sm:$0xf]
  %v28 = vld [vmem:[%s1 + $0x30] sm:$0xf]
  %v29 = vld [vmem:[%s1 + $0x34] sm:$0xf]
  %v30 = vld [vmem:[%s1 + $0x38] sm:$0xf]
  %v31 = vld [vmem:[%s1 + $0x3c] sm:$0xf]
  %v32 = vld [vmem:[%s2] sm:$0x1]
  %v34 = vlaneseq
  %v35 = vshrl.u32 %v34, 7
  %v36 = vsub.s32 0, %v35
  %v37 = vrot.slane %v32, %v36
  %v55 = vunpack.c.l.b16 %v16
  %v56 = vunpack.c.l.b16 %v17
  %v57 = vunpack.c.l.b16 %v18
  %v58 = vunpack.c.l.b16 %v19
  %v59 = vunpack.c.l.b16 %v20
  %v60 = vunpack.c.l.b16 %v21
  %v61 = vunpack.c.l.b16 %v22
  %v62 = vunpack.c.l.b16 %v23
  %v63 = vunpack.c.l.b16 %v24
  %v64 = vunpack.c.l.b16 %v25
  %v65 = vunpack.c.l.b16 %v26
  %v66 = vunpack.c.l.b16 %v27
  %v67 = vunpack.c.l.b16 %v28
  %v68 = vunpack.c.l.b16 %v29
  %v69 = vunpack.c.l.b16 %v30
  %v70 = vunpack.c.l.b16 %v31
  %v71 = vpack.c.b16 %v56, %v55
  %v72 = vpack.c.b16 %v58, %v57
  %v73 = vpack.c.b16 %v60, %v59
  %v74 = vpack.c.b16 %v62, %v61
  %v75 = vpack.c.b16 %v64, %v63
  %v76 = vpack.c.b16 %v66, %v65
  %v77 = vpack.c.b16 %v68, %v67
  %v78 = vpack.c.b16 %v70, %v69
  %87 = vmatprep.subr.bf16.mxu0 0
  %88 = vmatpush1.bf16.msra.mxu0 %v78
  %89 = vmatprep.subr.bf16.mxu0 0
  %90 = vmatpush1.bf16.msra.mxu0 %v77
  %91 = vmatprep.subr.bf16.mxu0 0
  %92 = vmatpush1.bf16.msra.mxu0 %v76
  %93 = vmatprep.subr.bf16.mxu0 0
  %94 = vmatpush1.bf16.msra.mxu0 %v75
  %95 = vmatprep.subr.bf16.mxu0 0
  %96 = vmatpush1.bf16.msra.mxu0 %v74
  %97 = vmatprep.subr.bf16.mxu0 0
  %98 = vmatpush1.bf16.msra.mxu0 %v73
  %99 = vmatprep.subr.bf16.mxu0 0
  %100 = vmatpush1.bf16.msra.mxu0 %v72
  %101 = vmatprep.subr.bf16.mxu0 0
  %102 = vmatpush1.bf16.msra.mxu0 %v71
  %103 = vmatprep.subr.bf16.mxu0 0
  %104 = vmatpush2.bf16.msra.mxu0 0
  %105 = vmatprep.subr.bf16.mxu0 0
  %106 = vmatpush2.bf16.msra.mxu0 0
  %107 = vmatprep.subr.bf16.mxu0 0
  %108 = vmatpush2.bf16.msra.mxu0 0
  %109 = vmatprep.subr.bf16.mxu0 0
  %110 = vmatpush2.bf16.msra.mxu0 0
  %111 = vmatprep.subr.bf16.mxu0 0
  %112 = vmatpush2.bf16.msra.mxu0 0
  %113 = vmatprep.subr.bf16.mxu0 0
  %114 = vmatpush2.bf16.msra.mxu0 0
  %115 = vmatprep.subr.bf16.mxu0 0
  %116 = vmatpush2.bf16.msra.mxu0 0
  %117 = vmatprep.subr.bf16.mxu0 0
  %118 = vmatpush2.bf16.msra.mxu0 0
  %119 = vmatprep.mubr.bf16.mxu0 0
  %120 = vmatmul.mubr.bf16.gmra.mxu0 %v15
  %v121 = vpop.f32.mrf.mxu0
  %v122 = vadd.f32 %v37, %v121
  %v123 = vpop.f32.mrf.mxu0
  %v124 = vpop.f32.mrf.mxu0
  %v125 = vpop.f32.mrf.mxu0
  %126 = vdwg.mxu0
  %v127 = vpack.c.bf16 %v122, %v122
  %128 = vst [vmem:[%s3] sm:$0xf] %v127
  // Predicated region
  $region14: #{lottenet_forward.3} parent=0 // pred_check
    _
  $region15: #{lottenet_forward.3} parent=0 // pred_check_branch
    %130 = sbr.rel (0) target = $region17
  $region16: #{lottenet_forward.3} parent=0 // pred_region
    _
  $region17: #{lottenet_forward.3} parent=0 // pred_fallthru
    _
  // Predicated region
  $region18: #{lottenet_forward.3} parent=0 // pred_check
    _
  $region19: #{lottenet_forward.3} parent=0 // pred_check_branch
    %132 = sbr.rel (0) target = $region21
  $region20: #{lottenet_forward.3} parent=0 // pred_region
    _
  $region21: #{lottenet_forward.3} parent=0 // pred_fallthru
    _

// kernel: lottenet_forward.2
$region0: #{lottenet_forward.2}
  #allocation0 [shape = 'u32[]', space=smem, size = 0x4, offset = 0x4, fixed_abs, tag = 'smem constant byte address 0x4 - core index']
  #allocation1 [shape = 'u32[144,128]{1,0:T(1,128)}', space=vmem, size = 0x12000, scoped, tag = 'internal scratch']
  #allocation2 [shape = 'f32[1,128]{1,0:T(1,128)}', space=vmem, size = 0x200, scoped, tag = 'scratch operand']
  %s0 = inlined_call_operand.vmem [shape: bf16[2,64,27], index: 0, kind: input, shape index: {}]
  %s1 = inlined_call_operand.vmem [shape: bf16[27,128], index: 1, kind: input, shape index: {}]
  %s2 = inlined_call_operand.vmem [shape: f32[1,128], index: 2, kind: input, shape index: {}]
  %s3 = inlined_call_operand.vmem [shape: bf16[128,128], index: 3, kind: input, shape index: {}]
  %s4 = inlined_call_operand.vmem [shape: f32[1,128], index: 4, kind: input, shape index: {}]
  %s5 = inlined_call_operand.vmem [shape: bf16[2,8,128], index: 5, kind: output, shape index: {}]
  %s6 = sld [smem:[#allocation0]]
  $region61: #{lottenet_forward.2} parent=0
    _
  %s8 = ssub.s32 1, %s6
  %s9 = scalar_select 0, %s8, %s6
  loop: start=0, step=1, limit=4
  $region2: #{lottenet_forward.2} parent=0 // loop_pre_header
    _
  $region3: #{lottenet_forward.2} parent=0 // loop_header
    %s11 = sphi 0, %s15
    %p12 = scmp.ge.s32.totalorder %s11, 4
    %s18 = sphi 0, %s30
    %s19 = sphi 0, %s26
    %s20 = sphi 0, %s18
    %s21 = sphi 0, %s19
    %s22 = sphi 0, %s20
    %s23 = sphi 0, %s21
    %s35 = sphi 0, %s37
    %s38 = sphi 0, %s35
    %s39 = sphi 0, %s38
    %s55 = sphi 0, %s39
    %s59 = sphi 0, %s59
    %s61 = sphi 0, %s59
    %s62 = sphi 0, %s61
    %s76 = sphi 0, %s62
    %s80 = sphi 0, %s80
    %s82 = sphi 0, %s80
    %s83 = sphi 0, %s82
    %s97 = sphi 0, %s83
    %s101 = sphi 0, %s101
    %s103 = sphi 0, %s101
    %s104 = sphi 0, %s103
    %s118 = sphi 0, %s104
    %s122 = sphi 0, %s122
    %s124 = sphi 0, %s122
    %s125 = sphi 0, %s124
    %s139 = sphi 0, %s125
    %s145 = sphi 0, %s147
    %s148 = sphi 0, %s145
    %s149 = sphi 0, %s148
    %s165 = sphi 0, %s149
  $region4: #{lottenet_forward.2} parent=0 // loop_header_branch
    %14 = sbr.rel (%p12) target = $region8
  $region5: #{lottenet_forward.2} parent=0 // loop_body
    %s16 = ssub.s32 %s11, 1
    %s17 = ssub.s32 %s11, 2
    %s24 = sadd.s32 1, %s19
    %p25 = scmp.ge.s32.totalorder %s24, 1
    %s26 = scalar_select %p25, 0, %s24
    %s27 = sadd.s32 1, %s18
    %s28 = scalar_select %p25, %s27, %s18
    %p29 = scmp.ge.s32.totalorder %s28, 2
    %s30 = scalar_select %p29, 0, %s28
    %s31 = ssub.s32 %s18, %s30
    %s32 = ssub.s32 %s19, %s26
    %s33 = sor.u32 %s31, %s32
    %p34 = scmp.eq.s32.totalorder %s33, 0
    %s36 = sadd.s32 %s35, 1
    %s37 = scalar_select %p34, %s35, %s36
    %p40 = pneg %p34
    %p41 = scmp.eq.s32.totalorder %s11, 1
    %p42 = por %p40, %p41
    %p43 = scmp.ne.s32.totalorder %s35, %s38
    %p44 = scmp.eq.s32.totalorder %s11, 0
    %p45 = por %p43, %p44
    %p46 = scmp.ne.s32.totalorder %s35, %s38
    %p47 = scmp.eq.s32.totalorder %s16, 1
    %p48 = por %p46, %p47
    %p49 = scmp.ne.s32.totalorder %s38, %s39
    %p50 = scmp.eq.s32.totalorder %s16, 0
    %p51 = por %p49, %p50
    %p52 = scmp.ne.s32.totalorder %s38, %s39
    %p53 = scmp.eq.s32.totalorder %s17, 1
    %p54 = por %p52, %p53
    %p56 = scmp.ne.s32.totalorder %s39, %s55
    %p57 = scmp.eq.s32.totalorder %s17, 0
    %p58 = por %p56, %p57
    %s60 = sadd.s32 %s59, 1
    %p63 = scmp.eq.s32.totalorder %s11, 1
    %p64 = scmp.ne.s32.totalorder %s59, %s61
    %p65 = scmp.eq.s32.totalorder %s11, 0
    %p66 = por %p64, %p65
    %p67 = scmp.ne.s32.totalorder %s59, %s61
    %p68 = scmp.eq.s32.totalorder %s16, 1
    %p69 = por %p67, %p68
    %p70 = scmp.ne.s32.totalorder %s61, %s62
    %p71 = scmp.eq.s32.totalorder %s16, 0
    %p72 = por %p70, %p71
    %p73 = scmp.ne.s32.totalorder %s61, %s62
    %p74 = scmp.eq.s32.totalorder %s17, 1
    %p75 = por %p73, %p74
    %p77 = scmp.ne.s32.totalorder %s62, %s76
    %p78 = scmp.eq.s32.totalorder %s17, 0
    %p79 = por %p77, %p78
    %s81 = sadd.s32 %s80, 1
    %p84 = scmp.eq.s32.totalorder %s11, 1
    %p85 = scmp.ne.s32.totalorder %s80, %s82
    %p86 = scmp.eq.s32.totalorder %s11, 0
    %p87 = por %p85, %p86
    %p88 = scmp.ne.s32.totalorder %s80, %s82
    %p89 = scmp.eq.s32.totalorder %s16, 1
    %p90 = por %p88, %p89
    %p91 = scmp.ne.s32.totalorder %s82, %s83
    %p92 = scmp.eq.s32.totalorder %s16, 0
    %p93 = por %p91, %p92
    %p94 = scmp.ne.s32.totalorder %s82, %s83
    %p95 = scmp.eq.s32.totalorder %s17, 1
    %p96 = por %p94, %p95
    %p98 = scmp.ne.s32.totalorder %s83, %s97
    %p99 = scmp.eq.s32.totalorder %s17, 0
    %p100 = por %p98, %p99
    %s102 = sadd.s32 %s101, 1
    %p105 = scmp.eq.s32.totalorder %s11, 1
    %p106 = scmp.ne.s32.totalorder %s101, %s103
    %p107 = scmp.eq.s32.totalorder %s11, 0
    %p108 = por %p106, %p107
    %p109 = scmp.ne.s32.totalorder %s101, %s103
    %p110 = scmp.eq.s32.totalorder %s16, 1
    %p111 = por %p109, %p110
    %p112 = scmp.ne.s32.totalorder %s103, %s104
    %p113 = scmp.eq.s32.totalorder %s16, 0
    %p114 = por %p112, %p113
    %p115 = scmp.ne.s32.totalorder %s103, %s104
    %p116 = scmp.eq.s32.totalorder %s17, 1
    %p117 = por %p115, %p116
    %p119 = scmp.ne.s32.totalorder %s104, %s118
    %p120 = scmp.eq.s32.totalorder %s17, 0
    %p121 = por %p119, %p120
    %s123 = sadd.s32 %s122, 1
    %p126 = scmp.eq.s32.totalorder %s11, 1
    %p127 = scmp.ne.s32.totalorder %s122, %s124
    %p128 = scmp.eq.s32.totalorder %s11, 0
    %p129 = por %p127, %p128
    %p130 = scmp.ne.s32.totalorder %s122, %s124
    %p131 = scmp.eq.s32.totalorder %s16, 1
    %p132 = por %p130, %p131
    %p133 = scmp.ne.s32.totalorder %s124, %s125
    %p134 = scmp.eq.s32.totalorder %s16, 0
    %p135 = por %p133, %p134
    %p136 = scmp.ne.s32.totalorder %s124, %s125
    %p137 = scmp.eq.s32.totalorder %s17, 1
    %p138 = por %p136, %p137
    %p140 = scmp.ne.s32.totalorder %s125, %s139
    %p141 = scmp.eq.s32.totalorder %s17, 0
    %p142 = por %p140, %p141
    %s143 = ssub.s32 %s18, %s30
    %p144 = scmp.eq.s32.totalorder %s143, 0
    %s146 = sadd.s32 %s145, 1
    %s147 = scalar_select %p144, %s145, %s146
    %p150 = pneg %p144
    %p151 = scmp.eq.s32.totalorder %s11, 1
    %p152 = por %p150, %p151
    %p153 = scmp.ne.s32.totalorder %s145, %s148
    %p154 = scmp.eq.s32.totalorder %s11, 0
    %p155 = por %p153, %p154
    %p156 = scmp.ne.s32.totalorder %s145, %s148
    %p157 = scmp.eq.s32.totalorder %s16, 1
    %p158 = por %p156, %p157
    %p159 = scmp.ne.s32.totalorder %s148, %s149
    %p160 = scmp.eq.s32.totalorder %s16, 0
    %p161 = por %p159, %p160
    %p162 = scmp.ne.s32.totalorder %s148, %s149
    %p163 = scmp.eq.s32.totalorder %s17, 1
    %p164 = por %p162, %p163
    %p166 = scmp.ne.s32.totalorder %s149, %s165
    %p167 = scmp.eq.s32.totalorder %s17, 0
    %p168 = por %p166, %p167
    %p169 = scmp.le.s32.totalorder 1, %s11
    %p170 = scmp.lt.s32.totalorder %s11, 3
    %p171 = pnand %p169, %p170
    %p172 = pneg %p171
    // Predicated region
    $region9: #{lottenet_forward.2} parent=5 // pred_check
      _
    $region10: #{lottenet_forward.2} parent=5 // pred_check_branch
      %174 = sbr.rel (%p171) target = $region12
    $region11: #{lottenet_forward.2} parent=5 // pred_region
      %s175 = ssub.s32 %s11, 1
      // Predicated region
      $region13: #{lottenet_forward.2} parent=11 // pred_check
        %p176 = pneg %p72
      $region14: #{lottenet_forward.2} parent=11 // pred_check_branch
        %178 = sbr.rel (%p176) target = $region16
      $region15: #{lottenet_forward.2} parent=11 // pred_region
        _
      $region16: #{lottenet_forward.2} parent=11 // pred_fallthru
        _
      // Predicated region
      $region17: #{lottenet_forward.2} parent=11 // pred_check
        %p179 = pneg %p93
      $region18: #{lottenet_forward.2} parent=11 // pred_check_branch
        %181 = sbr.rel (%p179) target = $region20
      $region19: #{lottenet_forward.2} parent=11 // pred_region
        _
      $region20: #{lottenet_forward.2} parent=11 // pred_fallthru
        _
      // Predicated region
      $region21: #{lottenet_forward.2} parent=11 // pred_check
        %p182 = pneg %p114
      $region22: #{lottenet_forward.2} parent=11 // pred_check_branch
        %184 = sbr.rel (%p182) target = $region24
      $region23: #{lottenet_forward.2} parent=11 // pred_region
        _
      $region24: #{lottenet_forward.2} parent=11 // pred_fallthru
        _
      // Predicated region
      $region25: #{lottenet_forward.2} parent=11 // pred_check
        %p185 = pneg %p135
      $region26: #{lottenet_forward.2} parent=11 // pred_check_branch
        %187 = sbr.rel (%p185) target = $region28
      $region27: #{lottenet_forward.2} parent=11 // pred_region
        _
      $region28: #{lottenet_forward.2} parent=11 // pred_fallthru
        _
    $region12: #{lottenet_forward.2} parent=5 // pred_fallthru
      _
    %p188 = scmp.lt.s32.totalorder %s11, 2
    // Predicated region
    $region29: #{lottenet_forward.2} parent=5 // pred_check
      %p189 = pneg %p188
    $region30: #{lottenet_forward.2} parent=5 // pred_check_branch
      %191 = sbr.rel (%p189) target = $region32
    $region31: #{lottenet_forward.2} parent=5 // pred_region
      // Predicated region
      $region33: #{lottenet_forward.2} parent=31 // pred_check
        %p192 = pneg %p45
      $region34: #{lottenet_forward.2} parent=31 // pred_check_branch
        %194 = sbr.rel (%p192) target = $region36
      $region35: #{lottenet_forward.2} parent=31 // pred_region
        %s195 = smul.u32 8, %s19
        %p196 = scmp.lt.s32.totalorder %s18, 1
        %s197 = scalar_select %p196, %s18, 1
        %p198 = scmp.lt.s32.totalorder %s195, 7
        %s199 = scalar_select %p198, %s195, 7
        %s200 = smul.addr %s197, 8
        %s201 = sadd.s32 %s199, %s200
        %s202 = smul.addr %s201, 4
        %s203 = scalar_lea.vmem %s0, %s202
        %s204 = smul.u32 8, %s19
      $region36: #{lottenet_forward.2} parent=31 // pred_fallthru
        _
    $region32: #{lottenet_forward.2} parent=5 // pred_fallthru
      _
    %p205 = scmp.le.s32.totalorder 1, %s11
    %p206 = scmp.lt.s32.totalorder %s11, 3
    %p207 = pnand %p205, %p206
    %p208 = pneg %p207
    // Predicated region
    $region37: #{lottenet_forward.2} parent=5 // pred_check
      _
    $region38: #{lottenet_forward.2} parent=5 // pred_check_branch
      %210 = sbr.rel (%p207) target = $region40
    $region39: #{lottenet_forward.2} parent=5 // pred_region
      %s211 = ssub.s32 %s11, 1
      %s212 = smul.u32 8, %s21
      %p213 = scmp.lt.s32.totalorder %s20, 1
      %s214 = scalar_select %p213, %s20, 1
      %p215 = scmp.lt.s32.totalorder %s212, 7
      %s216 = scalar_select %p215, %s212, 7
      %s217 = smul.addr %s214, 8
      %s218 = sadd.s32 %s216, %s217
      %s219 = smul.addr %s218, 4
      %s220 = scalar_lea.vmem %s0, %s219
      %p221 = pneg %p51
      %p222 = pneg %p48
      %p223 = pneg %p72
      %p224 = pneg %p69
      %p225 = pneg %p93
      %p226 = pneg %p90
      %p227 = pneg %p114
      %p228 = pneg %p111
      %p229 = pneg %p135
      %p230 = pneg %p132
      %p231 = pneg %p161
      %p232 = pneg %p158
      %p233 = scmp.lt.s32.totalorder %s20, 1
      %s234 = scalar_select %p233, %s20, 1
      %s235 = smul.addr %s234, 4
      %s236 = scalar_lea.vmem %s5, %s235
      %s237 = smul.u32 8, %s21
      %p238 = scmp.lt.s32.totalorder %s20, 1
      %s239 = scalar_select %p238, %s20, 1
      %p240 = scmp.lt.s32.totalorder %s237, 7
      %s241 = scalar_select %p240, %s237, 7
      %s242 = smul.addr %s239, 8
      %s243 = sadd.s32 %s241, %s242
      %s244 = smul.addr %s243, 4
      %s245 = scalar_lea.vmem %s0, %s244
      %s246 = smul.u32 8, %s21
      %p247 = scmp.lt.s32.totalorder %s20, 1
      %s248 = scalar_select %p247, %s20, 1
      %s249 = smul.addr %s248, 4
      %s250 = scalar_lea.vmem %s5, %s249
      %p252 = scmp.eq.s32.totalorder %s21, 0
      // Predicated region
      $region41: #{lottenet_forward.2} parent=39 // pred_check
        %p253 = pneg %p252
      $region42: #{lottenet_forward.2} parent=39 // pred_check_branch
        %255 = sbr.rel (%p253) target = $region44
      $region43: #{lottenet_forward.2} parent=39 // pred_region
        %256 = vst [vmem:[#allocation2] sm:$0x1] 0.0
      $region44: #{lottenet_forward.2} parent=39 // pred_fallthru
        _
      %v257 = vld [vmem:[%s245] sm:$0xf]
      %v258 = vld [vmem:[%s245 + $0x4] sm:$0xf]
      %v259 = vld [vmem:[%s245 + $0x8] sm:$0xf]
      %v260 = vld [vmem:[%s245 + $0xc] sm:$0xf]
      %v261 = vld [vmem:[%s245 + $0x10] sm:$0xf]
      %v262 = vld [vmem:[%s245 + $0x14] sm:$0xf]
      %v263 = vld [vmem:[%s245 + $0x18] sm:$0xf]
      %v264 = vld [vmem:[%s245 + $0x1c] sm:$0xf]
      %v265 = vld [vmem:[%s1] sm:$0xf]
      %v266 = vld [vmem:[%s1 + $0x4] sm:$0xf]
      %v267 = vld [vmem:[%s1 + $0x8] sm:$0xf]
      %v268 = vld [vmem:[%s1 + $0xc] sm:$0x3]
      %v269 = vld [vmem:[%s2] sm:$0x1]
      %v271 = vlaneseq
      %v272 = vshrl.u32 %v271, 7
      %v273 = vsub.s32 0, %v272
      %v274 = vrot.slane %v269, %v273
      %v284 = vunpack.c.l.b16 %v257
      %v285 = vunpack.c.l.b16 %v258
      %v286 = vunpack.c.l.b16 %v259
      %v287 = vunpack.c.l.b16 %v260
      %v288 = vunpack.c.l.b16 %v261
      %v289 = vunpack.c.l.b16 %v262
      %v290 = vunpack.c.l.b16 %v263
      %v291 = vunpack.c.l.b16 %v264
      %v292 = vpack.c.b16 %v285, %v284
      %v293 = vpack.c.b16 %v287, %v286
      %v294 = vpack.c.b16 %v289, %v288
      %v295 = vpack.c.b16 %v291, %v290
      %v300 = vunpack.c.l.b16 %v265
      %v301 = vunpack.c.l.b16 %v266
      %v302 = vunpack.c.l.b16 %v267
      %v303 = vunpack.c.l.b16 %v268
      %v304 = vpack.c.b16 %v301, %v300
      %v305 = vpack.c.b16 %v303, %v302
      %vm307 = vcmask 220160
      %v309 = vsel %vm307, %v292, 0
      %v312 = vsel %vm307, %v293, 0
      %v315 = vsel %vm307, %v294, 0
      %v318 = vsel %vm307, %v295, 0
      %vm320 = vcmask 1044480
      %vm321 = vcmask 1045504
      %v322 = vsel %vm320, 4294967295, 65535
      %v323 = vsel %vm321, %v322, 0
      %v325 = vand.u32 %v305, %v323
      %327 = vmatprep.subr.bf16.mxu0 0
      %328 = vmatpush1.bf16.msra.mxu0 0
      %329 = vmatprep.subr.bf16.mxu0 0
      %330 = vmatpush1.bf16.msra.mxu0 0
      %331 = vmatprep.subr.bf16.mxu0 0
      %332 = vmatpush1.bf16.msra.mxu0 0
      %333 = vmatprep.subr.bf16.mxu0 0
      %334 = vmatpush1.bf16.msra.mxu0 0
      %335 = vmatprep.subr.bf16.mxu0 0
      %336 = vmatpush1.bf16.msra.mxu0 0
      %337 = vmatprep.subr.bf16.mxu0 0
      %338 = vmatpush1.bf16.msra.mxu0 0
      %339 = vmatprep.subr.bf16.mxu0 0
      %340 = vmatpush1.bf16.msra.mxu0 %v325
      %341 = vmatprep.subr.bf16.mxu0 0
      %342 = vmatpush1.bf16.msra.mxu0 %v304
      %343 = vmatprep.subr.bf16.mxu0 0
      %344 = vmatpush2.bf16.msra.mxu0 0
      %345 = vmatprep.subr.bf16.mxu0 0
      %346 = vmatpush2.bf16.msra.mxu0 0
      %347 = vmatprep.subr.bf16.mxu0 0
      %348 = vmatpush2.bf16.msra.mxu0 0
      %349 = vmatprep.subr.bf16.mxu0 0
      %350 = vmatpush2.bf16.msra.mxu0 0
      %351 = vmatprep.subr.bf16.mxu0 0
      %352 = vmatpush2.bf16.msra.mxu0 0
      %353 = vmatprep.subr.bf16.mxu0 0
      %354 = vmatpush2.bf16.msra.mxu0 0
      %355 = vmatprep.subr.bf16.mxu0 0
      %356 = vmatpush2.bf16.msra.mxu0 0
      %357 = vmatprep.subr.bf16.mxu0 0
      %358 = vmatpush2.bf16.msra.mxu0 0
      %359 = vmatprep.mubr.bf16.mxu0 0
      %360 = vmatmul.mubr.bf16.gmra.mxu0 %v309
      %v361 = vpop.f32.mrf.mxu0
      %v362 = vadd.f32 %v274, %v361
      %v363 = vpop.f32.mrf.mxu0
      %v364 = vpop.f32.mrf.mxu0
      %v365 = vadd.f32 %v274, %v364
      %v366 = vpop.f32.mrf.mxu0
      %367 = vmatprep.mubr.bf16.mxu0 0
      %368 = vmatmul.mubr.bf16.gmra.mxu0 %v312
      %v369 = vpop.f32.mrf.mxu0
      %v370 = vadd.f32 %v274, %v369
      %v371 = vpop.f32.mrf.mxu0
      %v372 = vpop.f32.mrf.mxu0
      %v373 = vadd.f32 %v274, %v372
      %v374 = vpop.f32.mrf.mxu0
      %375 = vmatprep.mubr.bf16.mxu0 0
      %376 = vmatmul.mubr.bf16.gmra.mxu0 %v315
      %v377 = vpop.f32.mrf.mxu0
      %v378 = vadd.f32 %v274, %v377
      %v379 = vpop.f32.mrf.mxu0
      %v380 = vpop.f32.mrf.mxu0
      %v381 = vadd.f32 %v274, %v380
      %v382 = vpop.f32.mrf.mxu0
      %383 = vmatprep.mubr.bf16.mxu0 0
      %384 = vmatmul.mubr.bf16.gmra.mxu0 %v318
      %v385 = vpop.f32.mrf.mxu0
      %v386 = vadd.f32 %v274, %v385
      %v387 = vpop.f32.mrf.mxu0
      %v388 = vpop.f32.mrf.mxu0
      %v389 = vadd.f32 %v274, %v388
      %v390 = vpop.f32.mrf.mxu0
      %391 = vdwg.mxu0
      %v392 = vxor.u32 %v362, 2147483648
      %v393 = vxor.u32 %v365, 2147483648
      %v394 = vxor.u32 %v370, 2147483648
      %v395 = vxor.u32 %v373, 2147483648
      %v396 = vxor.u32 %v378, 2147483648
      %v397 = vxor.u32 %v381, 2147483648
      %v398 = vxor.u32 %v386, 2147483648
      %v399 = vxor.u32 %v389, 2147483648
      %v400 = vmul.f32 %v392, 1.442695
      %v401 = vpow.pop %v400
      %v402 = vmul.f32 %v393, 1.442695
      %v403 = vpow.pop %v402
      %v404 = vmul.f32 %v394, 1.442695
      %v405 = vpow.pop %v404
      %v406 = vmul.f32 %v395, 1.442695
      %v407 = vpow.pop %v406
      %v408 = vmul.f32 %v396, 1.442695
      %v409 = vpow.pop %v408
      %v410 = vmul.f32 %v397, 1.442695
      %v411 = vpow.pop %v410
      %v412 = vmul.f32 %v398, 1.442695
      %v413 = vpow.pop %v412
      %v414 = vmul.f32 %v399, 1.442695
      %v415 = vpow.pop %v414
      %v416 = vadd.f32 %v401, 1.0
      %v417 = vadd.f32 %v403, 1.0
      %v418 = vadd.f32 %v405, 1.0
      %v419 = vadd.f32 %v407, 1.0
      %v420 = vadd.f32 %v409, 1.0
      %v421 = vadd.f32 %v411, 1.0
      %v422 = vadd.f32 %v413, 1.0
      %v423 = vadd.f32 %v415, 1.0
      %v424 = vrcp.pop %v416
      %v425 = vmul.f32 1.0, %v424
      %v426 = vrcp.pop %v417
      %v427 = vmul.f32 1.0, %v426
      %v428 = vrcp.pop %v418
      %v429 = vmul.f32 1.0, %v428
      %v430 = vrcp.pop %v419
      %v431 = vmul.f32 1.0, %v430
      %v432 = vrcp.pop %v420
      %v433 = vmul.f32 1.0, %v432
      %v434 = vrcp.pop %v421
      %v435 = vmul.f32 1.0, %v434
      %v436 = vrcp.pop %v422
      %v437 = vmul.f32 1.0, %v436
      %v438 = vrcp.pop %v423
      %v439 = vmul.f32 1.0, %v438
      %v440 = vmul.f32 %v362, %v425
      %v441 = vmul.f32 %v365, %v427
      %v442 = vmul.f32 %v370, %v429
      %v443 = vmul.f32 %v373, %v431
      %v444 = vmul.f32 %v378, %v433
      %v445 = vmul.f32 %v381, %v435
      %v446 = vmul.f32 %v386, %v437
      %v447 = vmul.f32 %v389, %v439
      %v448 = vpack.c.bf16 %v441, %v440
      %v449 = vpack.c.bf16 %v443, %v442
      %v450 = vpack.c.bf16 %v445, %v444
      %v451 = vpack.c.bf16 %v447, %v446
      %v452 = vld [vmem:[%s3] sm:$0xf]
      %v453 = vld [vmem:[%s3 + $0x4] sm:$0xf]
      %v454 = vld [vmem:[%s3 + $0x8] sm:$0xf]
      %v455 = vld [vmem:[%s3 + $0xc] sm:$0xf]
      %v456 = vld [vmem:[%s3 + $0x10] sm:$0xf]
      %v457 = vld [vmem:[%s3 + $0x14] sm:$0xf]
      %v458 = vld [vmem:[%s3 + $0x18] sm:$0xf]
      %v459 = vld [vmem:[%s3 + $0x1c] sm:$0xf]
      %v460 = vld [vmem:[%s3 + $0x20] sm:$0xf]
      %v461 = vld [vmem:[%s3 + $0x24] sm:$0xf]
      %v462 = vld [vmem:[%s3 + $0x28] sm:$0xf]
      %v463 = vld [vmem:[%s3 + $0x2c] sm:$0xf]
      %v464 = vld [vmem:[%s3 + $0x30] sm:$0xf]
      %v465 = vld [vmem:[%s3 + $0x34] sm:$0xf]
      %v466 = vld [vmem:[%s3 + $0x38] sm:$0xf]
      %v467 = vld [vmem:[%s3 + $0x3c] sm:$0xf]
      %v468 = vld [vmem:[%s4] sm:$0x1]
      %v470 = vlaneseq
      %v471 = vshrl.u32 %v470, 7
      %v472 = vsub.s32 0, %v471
      %v473 = vrot.slane %v468, %v472
      %v491 = vunpack.c.l.b16 %v452
      %v492 = vunpack.c.l.b16 %v453
      %v493 = vunpack.c.l.b16 %v454
      %v494 = vunpack.c.l.b16 %v455
      %v495 = vunpack.c.l.b16 %v456
      %v496 = vunpack.c.l.b16 %v457
      %v497 = vunpack.c.l.b16 %v458
      %v498 = vunpack.c.l.b16 %v459
      %v499 = vunpack.c.l.b16 %v460
      %v500 = vunpack.c.l.b16 %v461
      %v501 = vunpack.c.l.b16 %v462
      %v502 = vunpack.c.l.b16 %v463
      %v503 = vunpack.c.l.b16 %v464
      %v504 = vunpack.c.l.b16 %v465
      %v505 = vunpack.c.l.b16 %v466
      %v506 = vunpack.c.l.b16 %v467
      %v507 = vpack.c.b16 %v492, %v491
      %v508 = vpack.c.b16 %v494, %v493
      %v509 = vpack.c.b16 %v496, %v495
      %v510 = vpack.c.b16 %v498, %v497
      %v511 = vpack.c.b16 %v500, %v499
      %v512 = vpack.c.b16 %v502, %v501
      %v513 = vpack.c.b16 %v504, %v503
      %v514 = vpack.c.b16 %v506, %v505
      %523 = vmatprep.subr.bf16.mxu0 0
      %524 = vmatpush1.bf16.msra.mxu0 %v514
      %525 = vmatprep.subr.bf16.mxu0 0
      %526 = vmatpush1.bf16.msra.mxu0 %v513
      %527 = vmatprep.subr.bf16.mxu0 0
      %528 = vmatpush1.bf16.msra.mxu0 %v512
      %529 = vmatprep.subr.bf16.mxu0 0
      %530 = vmatpush1.bf16.msra.mxu0 %v511
      %531 = vmatprep.subr.bf16.mxu0 0
      %532 = vmatpush1.bf16.msra.mxu0 %v510
      %533 = vmatprep.subr.bf16.mxu0 0
      %534 = vmatpush1.bf16.msra.mxu0 %v509
      %535 = vmatprep.subr.bf16.mxu0 0
      %536 = vmatpush1.bf16.msra.mxu0 %v508
      %537 = vmatprep.subr.bf16.mxu0 0
      %538 = vmatpush1.bf16.msra.mxu0 %v507
      %539 = vmatprep.subr.bf16.mxu0 0
      %540 = vmatpush2.bf16.msra.mxu0 0
      %541 = vmatprep.subr.bf16.mxu0 0
      %542 = vmatpush2.bf16.msra.mxu0 0
      %543 = vmatprep.subr.bf16.mxu0 0
      %544 = vmatpush2.bf16.msra.mxu0 0
      %545 = vmatprep.subr.bf16.mxu0 0
      %546 = vmatpush2.bf16.msra.mxu0 0
      %547 = vmatprep.subr.bf16.mxu0 0
      %548 = vmatpush2.bf16.msra.mxu0 0
      %549 = vmatprep.subr.bf16.mxu0 0
      %550 = vmatpush2.bf16.msra.mxu0 0
      %551 = vmatprep.subr.bf16.mxu0 0
      %552 = vmatpush2.bf16.msra.mxu0 0
      %553 = vmatprep.subr.bf16.mxu0 0
      %554 = vmatpush2.bf16.msra.mxu0 0
      %555 = vmatprep.mubr.bf16.mxu0 0
      %556 = vmatmul.mubr.bf16.gmra.mxu0 %v448
      %v557 = vpop.f32.mrf.mxu0
      %v558 = vadd.f32 %v473, %v557
      %v559 = vpop.f32.mrf.mxu0
      %v560 = vpop.f32.mrf.mxu0
      %v561 = vadd.f32 %v473, %v560
      %v562 = vpop.f32.mrf.mxu0
      %563 = vmatprep.mubr.bf16.mxu0 0
      %564 = vmatmul.mubr.bf16.gmra.mxu0 %v449
      %v565 = vpop.f32.mrf.mxu0
      %v566 = vadd.f32 %v473, %v565
      %v567 = vpop.f32.mrf.mxu0
      %v568 = vpop.f32.mrf.mxu0
      %v569 = vadd.f32 %v473, %v568
      %v570 = vpop.f32.mrf.mxu0
      %571 = vmatprep.mubr.bf16.mxu0 0
      %572 = vmatmul.mubr.bf16.gmra.mxu0 %v450
      %v573 = vpop.f32.mrf.mxu0
      %v574 = vadd.f32 %v473, %v573
      %v575 = vpop.f32.mrf.mxu0
      %v576 = vpop.f32.mrf.mxu0
      %v577 = vadd.f32 %v473, %v576
      %v578 = vpop.f32.mrf.mxu0
      %579 = vmatprep.mubr.bf16.mxu0 0
      %580 = vmatmul.mubr.bf16.gmra.mxu0 %v451
      %v581 = vpop.f32.mrf.mxu0
      %v582 = vadd.f32 %v473, %v581
      %v583 = vpop.f32.mrf.mxu0
      %v584 = vpop.f32.mrf.mxu0
      %v585 = vadd.f32 %v473, %v584
      %v586 = vpop.f32.mrf.mxu0
      %587 = vdwg.mxu0
      %v588 = vxor.u32 %v558, 2147483648
      %v589 = vxor.u32 %v561, 2147483648
      %v590 = vxor.u32 %v566, 2147483648
      %v591 = vxor.u32 %v569, 2147483648
      %v592 = vxor.u32 %v574, 2147483648
      %v593 = vxor.u32 %v577, 2147483648
      %v594 = vxor.u32 %v582, 2147483648
      %v595 = vxor.u32 %v585, 2147483648
      %v596 = vmul.f32 %v588, 1.442695
      %v597 = vpow.pop %v596
      %v598 = vmul.f32 %v589, 1.442695
      %v599 = vpow.pop %v598
      %v600 = vmul.f32 %v590, 1.442695
      %v601 = vpow.pop %v600
      %v602 = vmul.f32 %v591, 1.442695
      %v603 = vpow.pop %v602
      %v604 = vmul.f32 %v592, 1.442695
      %v605 = vpow.pop %v604
      %v606 = vmul.f32 %v593, 1.442695
      %v607 = vpow.pop %v606
      %v608 = vmul.f32 %v594, 1.442695
      %v609 = vpow.pop %v608
      %v610 = vmul.f32 %v595, 1.442695
      %v611 = vpow.pop %v610
      %v612 = vadd.f32 %v597, 1.0
      %v613 = vadd.f32 %v599, 1.0
      %v614 = vadd.f32 %v601, 1.0
      %v615 = vadd.f32 %v603, 1.0
      %v616 = vadd.f32 %v605, 1.0
      %v617 = vadd.f32 %v607, 1.0
      %v618 = vadd.f32 %v609, 1.0
      %v619 = vadd.f32 %v611, 1.0
      %v620 = vrcp.pop %v612
      %v621 = vmul.f32 1.0, %v620
      %v622 = vrcp.pop %v613
      %v623 = vmul.f32 1.0, %v622
      %v624 = vrcp.pop %v614
      %v625 = vmul.f32 1.0, %v624
      %v626 = vrcp.pop %v615
      %v627 = vmul.f32 1.0, %v626
      %v628 = vrcp.pop %v616
      %v629 = vmul.f32 1.0, %v628
      %v630 = vrcp.pop %v617
      %v631 = vmul.f32 1.0, %v630
      %v632 = vrcp.pop %v618
      %v633 = vmul.f32 1.0, %v632
      %v634 = vrcp.pop %v619
      %v635 = vmul.f32 1.0, %v634
      %v636 = vmul.f32 %v558, %v621
      %v637 = vmul.f32 %v561, %v623
      %v638 = vmul.f32 %v566, %v625
      %v639 = vmul.f32 %v569, %v627
      %v640 = vmul.f32 %v574, %v629
      %v641 = vmul.f32 %v577, %v631
      %v642 = vmul.f32 %v582, %v633
      %v643 = vmul.f32 %v585, %v635
      %v644 = vld [vmem:[#allocation2] sm:$0x1]
      %v645 = vadd.f32 %v636, %v637
      %v646 = vadd.f32 %v645, %v638
      %v647 = vadd.f32 %v646, %v639
      %v648 = vadd.f32 %v647, %v640
      %v649 = vadd.f32 %v648, %v641
      %v650 = vadd.f32 %v649, %v642
      %v651 = vadd.f32 %v650, %v643
      %v652 = vrot.slane %v651, 4
      %v653 = vadd.f32 %v651, %v652
      %v654 = vrot.slane %v653, 2
      %v655 = vadd.f32 %v653, %v654
      %v656 = vrot.slane %v655, 1
      %v657 = vadd.f32 %v655, %v656
      %v658 = vadd.f32 %v644, %v657
      %659 = vst [vmem:[#allocation2] sm:$0x1] %v658
      // Predicated region
      $region45: #{lottenet_forward.2} parent=39 // pred_check
        %p660 = pneg %p252
      $region46: #{lottenet_forward.2} parent=39 // pred_check_branch
        %662 = sbr.rel (%p660) target = $region48
      $region47: #{lottenet_forward.2} parent=39 // pred_region
        %v663 = vld [vmem:[#allocation2] sm:$0x1]
        %v664 = vmul.f32 %v663, 0.015625
        %v665 = vpack.c.bf16 %v664, %v664
        %v667 = vpack.i.b16 %v665, %v665
        %v669 = vlaneseq
        %v670 = vshrl.u32 %v669, 7
        %v671 = vsub.s32 0, %v670
        %v672 = vrot.slane %v667, %v671
        %673 = vst [vmem:[%s250] sm:$0xf] %v672
      $region48: #{lottenet_forward.2} parent=39 // pred_fallthru
        _
      %p674 = scmp.lt.s32.totalorder %s20, 1
      %s675 = scalar_select %p674, %s20, 1
      %s676 = smul.addr %s675, 4
      %s677 = scalar_lea.vmem %s5, %s676
      // Predicated region
      $region49: #{lottenet_forward.2} parent=39 // pred_check
        %p678 = pneg %p158
      $region50: #{lottenet_forward.2} parent=39 // pred_check_branch
        %680 = sbr.rel (%p678) target = $region52
      $region51: #{lottenet_forward.2} parent=39 // pred_region
        _
      $region52: #{lottenet_forward.2} parent=39 // pred_fallthru
        _
    $region40: #{lottenet_forward.2} parent=5 // pred_fallthru
      _
    %p681 = scmp.le.s32.totalorder 2, %s11
    // Predicated region
    $region53: #{lottenet_forward.2} parent=5 // pred_check
      %p682 = pneg %p681
    $region54: #{lottenet_forward.2} parent=5 // pred_check_branch
      %684 = sbr.rel (%p682) target = $region56
    $region55: #{lottenet_forward.2} parent=5 // pred_region
      %s685 = ssub.s32 %s11, 2
      // Predicated region
      $region57: #{lottenet_forward.2} parent=55 // pred_check
        %p686 = pneg %p164
      $region58: #{lottenet_forward.2} parent=55 // pred_check_branch
        %688 = sbr.rel (%p686) target = $region60
      $region59: #{lottenet_forward.2} parent=55 // pred_region
        %p689 = scmp.lt.s32.totalorder %s22, 1
        %s690 = scalar_select %p689, %s22, 1
        %s691 = smul.addr %s690, 4
        %s692 = scalar_lea.vmem %s5, %s691
      $region60: #{lottenet_forward.2} parent=55 // pred_fallthru
        _
    $region56: #{lottenet_forward.2} parent=5 // pred_fallthru
      _
  $region6: #{lottenet_forward.2} parent=0 // loop_footer
    %s15 = sadd.s32 1, %s11
  $region7: #{lottenet_forward.2} parent=0 // loop_footer_branch
    %10 = sbr.rel target = $region3
  $region8: #{lottenet_forward.2} parent=0 // loop_exit
    _

</llo_original>
